<compile_context>
chip_gen: v6e
topology: v6e:2x2x1
jax: 0.10.0
libtpu: 0.0.40
codegen_flags: <defaults>
</compile_context>

<pallas_src>
import jax
import jax.numpy as jnp
from jax.experimental import pallas as pl
from jax.experimental.pallas import tpu as pltpu


def _cparams():
    return pltpu.CompilerParams(
        dimension_semantics=("parallel",),          # batch axis -> both TCs on v7x
        vmem_limit_bytes=32 * 1024 * 1024,
    )


# --------------- ConvTranspose2d(kernel=2, stride=2) as one matmul ----------
# stride == kernel, so there is no output overlap: a single
# (H*W, Cin) @ (Cin, 4*Cup) matmul per image, followed by depth-to-space.
def upsample_kernel(x_ref, w_ref, b_ref, o_ref):
    # x_ref: [1, M0, Cin], w_ref: [Cin, 4*Cup] packed as (ki*2+kj)*Cup + cout,
    # b_ref: [1, 4*Cup], o_ref: [1, M0, 4*Cup]
    o_ref[0] = (
        jnp.dot(x_ref[0], w_ref[...], preferred_element_type=jnp.float32)
        + b_ref[...]
    )


def conv_transpose2x2(x_nhwc, w, b):
    # x_nhwc: [N, H, W, Cin]; w: [Cin, 2, 2, Cup]; b: [Cup]
    N, H, W, Cin = x_nhwc.shape
    Cup = w.shape[-1]
    M0 = H * W
    x_flat = x_nhwc.reshape(N, M0, Cin)            # free (row-major) reshape
    w_flat = w.reshape(Cin, 4 * Cup)
    b_flat = jnp.tile(b, 4).reshape(1, 4 * Cup)
    y = pl.pallas_call(
        upsample_kernel,
        out_shape=jax.ShapeDtypeStruct((N, M0, 4 * Cup), jnp.float32),
        grid=(N,),
        in_specs=[pl.BlockSpec((1, M0, Cin), lambda n: (n, 0, 0)),
                  pl.BlockSpec((Cin, 4 * Cup), lambda n: (0, 0)),
                  pl.BlockSpec((1, 4 * Cup), lambda n: (0, 0))],
        out_specs=pl.BlockSpec((1, M0, 4 * Cup), lambda n: (n, 0, 0)),
        compiler_params=_cparams(),
    )(x_flat, w_flat, b_flat)
    # depth-to-space shuffle: out[n, 2i+ki, 2j+kj, c].  Pure layout; kept as
    # (cheap) XLA glue on the small upsampled tensor.
    y = y.reshape(N, H, W, 2, 2, Cup).transpose(0, 1, 3, 2, 4, 5)
    return y.reshape(N, 2 * H, 2 * W, Cup)


# ------------------- shared in-kernel im2col + single matmul ----------------
def _im2col_matmul(pad_s, patch_s, w_ref):
    # pad_s:   [H+2, W+2, C] zero-padded input tile (VMEM scratch)
    # patch_s: [H, W, 9*C]   im2col buffer          (VMEM scratch)
    # w_ref:   [9*C, Cout]   weights packed (dy,dx,cin) along K
    H, W, K9 = patch_s.shape
    C = K9 // 9
    for dy in range(3):
        for dx in range(3):
            k = dy * 3 + dx
            patch_s[:, :, k * C:(k + 1) * C] = pad_s[dy:dy + H, dx:dx + W, :]
    patches = patch_s[...].reshape(H * W, 9 * C)       # W % 8 == 0 -> cheap
    return jnp.dot(patches, w_ref[...], preferred_element_type=jnp.float32)


# ---- conv #1: fused channel-concat + pad + 3x3 conv + bias + BN partials ---
def conv1_kernel(xu_ref, pre_ref, w_ref, b_ref, o_ref, st_ref, pad_s, patch_s):
    _, H, W, _ = xu_ref.shape
    Cout = o_ref.shape[-1]
    # fused torch.cat(dim=channel) + zero padding=1, all inside VMEM
    pad_s[...] = jnp.zeros_like(pad_s)
    pad_s[1:1 + H, 1:1 + W, :] = jnp.concatenate(
        [xu_ref[0], pre_ref[0]], axis=-1)
    acc = _im2col_matmul(pad_s, patch_s, w_ref) + b_ref[...]     # [H*W, Cout]
    o_ref[0] = acc.reshape(H, W, Cout)
    # per-image BatchNorm partial statistics (sum, sum of squares)
    st_ref[0, 0:1, :] = jnp.sum(acc, axis=0, keepdims=True)
    st_ref[0, 1:2, :] = jnp.sum(acc * acc, axis=0, keepdims=True)


def conv3x3_fused_concat(xu, pre, w_hwio, b):
    N, H, W, Cup = xu.shape
    Csk = pre.shape[-1]
    C = Cup + Csk
    Cout = w_hwio.shape[-1]
    assert W % 8 == 0, "in-kernel reshape expects lane-tile friendly width"
    w_flat = w_hwio.reshape(9 * C, Cout)      # pack taps into K = 9*C
    return pl.pallas_call(
        conv1_kernel,
        out_shape=(jax.ShapeDtypeStruct((N, H, W, Cout), jnp.float32),
                   jax.ShapeDtypeStruct((N, 2, Cout), jnp.float32)),
        grid=(N,),
        in_specs=[pl.BlockSpec((1, H, W, Cup), lambda n: (n, 0, 0, 0)),
                  pl.BlockSpec((1, H, W, Csk), lambda n: (n, 0, 0, 0)),
                  pl.BlockSpec((9 * C, Cout), lambda n: (0, 0)),
                  pl.BlockSpec((1, Cout), lambda n: (0, 0))],
        out_specs=(pl.BlockSpec((1, H, W, Cout), lambda n: (n, 0, 0, 0)),
                   pl.BlockSpec((1, 2, Cout), lambda n: (n, 0, 0))),
        scratch_shapes=[pltpu.VMEM((H + 2, W + 2, C), jnp.float32),
                        pltpu.VMEM((H, W, 9 * C), jnp.float32)],
        compiler_params=_cparams(),
    )(xu, pre, w_flat, b.reshape(1, Cout))


# ---- conv #2: fused BN1-apply + ReLU + pad + 3x3 conv + bias + BN partials --
def conv2_kernel(a_ref, sc_ref, sh_ref, w_ref, b_ref, o_ref, st_ref,
                 pad_s, patch_s):
    _, H, W, _ = a_ref.shape
    Cout = o_ref.shape[-1]
    x = jnp.maximum(a_ref[0] * sc_ref[...] + sh_ref[...], 0.0)   # BN1 + ReLU
    pad_s[...] = jnp.zeros_like(pad_s)
    pad_s[1:1 + H, 1:1 + W, :] = x
    acc = _im2col_matmul(pad_s, patch_s, w_ref) + b_ref[...]
    o_ref[0] = acc.reshape(H, W, Cout)
    st_ref[0, 0:1, :] = jnp.sum(acc, axis=0, keepdims=True)
    st_ref[0, 1:2, :] = jnp.sum(acc * acc, axis=0, keepdims=True)


def conv3x3_fused_bnrelu_in(a_raw, scale_in, shift_in, w_hwio, b):
    N, H, W, Cin = a_raw.shape
    Cout = w_hwio.shape[-1]
    assert W % 8 == 0
    w_flat = w_hwio.reshape(9 * Cin, Cout)
    return pl.pallas_call(
        conv2_kernel,
        out_shape=(jax.ShapeDtypeStruct((N, H, W, Cout), jnp.float32),
                   jax.ShapeDtypeStruct((N, 2, Cout), jnp.float32)),
        grid=(N,),
        in_specs=[pl.BlockSpec((1, H, W, Cin), lambda n: (n, 0, 0, 0)),
                  pl.BlockSpec((1, Cin), lambda n: (0, 0)),
                  pl.BlockSpec((1, Cin), lambda n: (0, 0)),
                  pl.BlockSpec((9 * Cin, Cout), lambda n: (0, 0)),
                  pl.BlockSpec((1, Cout), lambda n: (0, 0))],
        out_specs=(pl.BlockSpec((1, H, W, Cout), lambda n: (n, 0, 0, 0)),
                   pl.BlockSpec((1, 2, Cout), lambda n: (n, 0, 0))),
        scratch_shapes=[pltpu.VMEM((H + 2, W + 2, Cin), jnp.float32),
                        pltpu.VMEM((H, W, 9 * Cin), jnp.float32)],
        compiler_params=_cparams(),
    )(a_raw, scale_in.reshape(1, Cin), shift_in.reshape(1, Cin),
      w_flat, b.reshape(1, Cout))


# ---------------- final BN2-apply + ReLU (elementwise, tiled over N) ---------
def bn_relu_kernel(x_ref, sc_ref, sh_ref, o_ref):
    o_ref[...] = jnp.maximum(x_ref[...] * sc_ref[...] + sh_ref[...], 0.0)


def bn_relu(x, scale, shift):
    N, H, W, C = x.shape
    return pl.pallas_call(
        bn_relu_kernel,
        out_shape=jax.ShapeDtypeStruct((N, H, W, C), jnp.float32),
        grid=(N,),
        in_specs=[pl.BlockSpec((1, H, W, C), lambda n: (n, 0, 0, 0)),
                  pl.BlockSpec((1, C), lambda n: (0, 0)),
                  pl.BlockSpec((1, C), lambda n: (0, 0))],
        out_specs=pl.BlockSpec((1, H, W, C), lambda n: (n, 0, 0, 0)),
        compiler_params=_cparams(),
    )(x, scale.reshape(1, C), shift.reshape(1, C))


def _bn_scale_shift(stats, count, gamma, beta, eps=1e-5):
    # stats: [N, 2, C] per-image (sum, sum-of-squares).  Finalizing the global
    # mean/var is a tiny per-channel op, done in plain jnp.
    s = jnp.sum(stats[:, 0, :], axis=0)
    sq = jnp.sum(stats[:, 1, :], axis=0)
    mean = s / count
    var = jnp.maximum(sq / count - mean * mean, 0.0)
    scale = gamma * jax.lax.rsqrt(var + eps)
    shift = beta - mean * scale
    return scale, shift


# --------------------------- UPsample.forward -------------------------------
def upsample_forward(params, x, pre_x):
    xu = conv_transpose2x2(x, params["w_up"], params["b_up"])
    # TODO(synk): bilinear F.interpolate(align_corners=True) branch is only
    # taken when spatial sizes mismatch; with k=2/s=2 and a standard 2x U-net
    # skip they always match, so it is not implemented.
    assert xu.shape[1:3] == pre_x.shape[1:3]
    N, H, W, _ = xu.shape
    count = N * H * W

    c1_raw, st1 = conv3x3_fused_concat(xu, pre_x, params["w1"], params["b1"])
    sc1, sh1 = _bn_scale_shift(st1, count, params["g1"], params["bt1"])

    c2_raw, st2 = conv3x3_fused_bnrelu_in(c1_raw, sc1, sh1,
                                          params["w2"], params["b2"])
    sc2, sh2 = _bn_scale_shift(st2, count, params["g2"], params["bt2"])

    return bn_relu(c2_raw, sc2, sh2)


# ------------------------------ reference -----------------------------------
def ref_forward(params, x, pre_x):
    N, H, W, Cin = x.shape
    Cup = params["w_up"].shape[-1]
    y = jnp.einsum("nhwc,cklo->nhkwlo", x, params["w_up"])
    y = y.reshape(N, 2 * H, 2 * W, Cup) + params["b_up"]
    cat = jnp.concatenate([y, pre_x], axis=-1)

    def block(z, w, b, g, bt):
        c = jax.lax.conv_general_dilated(
            z, w, (1, 1), "SAME", dimension_numbers=("NHWC", "HWIO", "NHWC")
        ) + b
        m = jnp.mean(c, axis=(0, 1, 2), keepdims=True)
        v = jnp.mean((c - m) ** 2, axis=(0, 1, 2), keepdims=True)
        return jnp.maximum((c - m) * jax.lax.rsqrt(v + 1e-5) * g + bt, 0.0)

    h = block(cat, params["w1"], params["b1"], params["g1"], params["bt1"])
    h = block(h, params["w2"], params["b2"], params["g2"], params["bt2"])
    return h


if __name__ == "__main__":
    in_ch, out_ch = 8, 8          # UPsample(in_channels=8, out_channels=8)
    cup = in_ch // 2
    N, H0, W0 = 2, 8, 8           # low-res input; skip connection is 2x spatial

    key = jax.random.PRNGKey(0)
    ks = jax.random.split(key, 14)
    params = {
        "w_up": 0.1 * jax.random.normal(ks[0], (in_ch, 2, 2, cup), jnp.float32),
        "b_up": 0.1 * jax.random.normal(ks[1], (cup,), jnp.float32),
        "w1": 0.1 * jax.random.normal(ks[2], (3, 3, in_ch, out_ch), jnp.float32),
        "b1": 0.1 * jax.random.normal(ks[3], (out_ch,), jnp.float32),
        "g1": 1.0 + 0.1 * jax.random.normal(ks[4], (out_ch,), jnp.float32),
        "bt1": 0.1 * jax.random.normal(ks[5], (out_ch,), jnp.float32),
        "w2": 0.1 * jax.random.normal(ks[6], (3, 3, out_ch, out_ch), jnp.float32),
        "b2": 0.1 * jax.random.normal(ks[7], (out_ch,), jnp.float32),
        "g2": 1.0 + 0.1 * jax.random.normal(ks[8], (out_ch,), jnp.float32),
        "bt2": 0.1 * jax.random.normal(ks[9], (out_ch,), jnp.float32),
    }

    # NHWC inputs (PyTorch NCHW equivalents: x=[2,8,8,8], pre_x=[2,4,16,16])
    x = jax.random.normal(ks[10], (N, H0, W0, in_ch), jnp.float32)
    pre_x = jax.random.normal(ks[11], (N, 2 * H0, 2 * W0, cup), jnp.float32)

    out = jax.block_until_ready(upsample_forward(params, x, pre_x))
    ref = jax.block_until_ready(ref_forward(params, x, pre_x))

    assert out.shape == (N, 2 * H0, 2 * W0, out_ch), out.shape
    assert jnp.allclose(out, ref, atol=1e-4, rtol=1e-4), float(
        jnp.max(jnp.abs(out - ref))
    )
    print("KERNEL_OK")
</pallas_src>

<mosaic_0001>
module attributes {stable_mosaic.version = 11 : i64} {
  func.func @upsample_kernel(%arg0: i32, %arg1: memref<1x64x8xf32, #tpu.memory_space<vmem>>, %arg2: memref<8x16xf32, #tpu.memory_space<vmem>>, %arg3: memref<1x16xf32, #tpu.memory_space<vmem>>, %arg4: memref<1x64x16xf32, #tpu.memory_space<vmem>>) attributes {dimension_semantics = [#tpu.dimension_semantics<parallel>], iteration_bounds = array<i64: 2>, scalar_prefetch = 0 : i64, scratch_operands = 0 : i64, tpu.core_type = #tpu.core_type<tc>, window_params = [{transform_indices = @transform_0, window_bounds = array<i64: 1, 64, 8>}, {pipeline_mode = #tpu.pipeline_mode<synchronous>, transform_indices = @transform_1, window_bounds = array<i64: 8, 16>}, {pipeline_mode = #tpu.pipeline_mode<synchronous>, transform_indices = @transform_2, window_bounds = array<i64: 1, 16>}, {transform_indices = @transform_3, window_bounds = array<i64: 1, 64, 16>}]} {
    %c0 = arith.constant 0 : index
    %c0_0 = arith.constant 0 : index
    %c0_1 = arith.constant 0 : index
    %0 = vector.load %arg1[%c0, %c0_0, %c0_1] : memref<1x64x8xf32, #tpu.memory_space<vmem>>, vector<1x64x8xf32>
    %1 = vector.shape_cast %0 : vector<1x64x8xf32> to vector<64x8xf32>
    %c0_2 = arith.constant 0 : index
    %c0_3 = arith.constant 0 : index
    %2 = vector.load %arg2[%c0_2, %c0_3] : memref<8x16xf32, #tpu.memory_space<vmem>>, vector<8x16xf32>
    %cst = arith.constant dense<0.000000e+00> : vector<64x16xf32>
    %3 = tpu.matmul %1, %2, %cst {dimension_numbers = #tpu.dot_dimension_numbers<[1], [0], [0], [1], [0, 0, 1, 1], [], []>} : vector<64x8xf32>, vector<8x16xf32>, vector<64x16xf32> -> vector<64x16xf32>
    %c0_4 = arith.constant 0 : index
    %c0_5 = arith.constant 0 : index
    %4 = vector.load %arg3[%c0_4, %c0_5] : memref<1x16xf32, #tpu.memory_space<vmem>>, vector<1x16xf32>
    %5 = vector.broadcast %4 : vector<1x16xf32> to vector<64x16xf32>
    %6 = arith.addf %3, %5 : vector<64x16xf32>
    %c0_6 = arith.constant 0 : index
    %c0_7 = arith.constant 0 : index
    %c0_8 = arith.constant 0 : index
    %7 = vector.load %arg4[%c0_6, %c0_7, %c0_8] : memref<1x64x16xf32, #tpu.memory_space<vmem>>, vector<1x64x16xf32>
    %8 = vector.shape_cast %7 : vector<1x64x16xf32> to vector<64x16xf32>
    %9 = vector.shape_cast %6 : vector<64x16xf32> to vector<1x64x16xf32>
    tpu.vector_store %arg4[%c0_6, %c0_7, %c0_8], %9 {strides = array<i32>} : memref<1x64x16xf32, #tpu.memory_space<vmem>>, vector<1x64x16xf32>,
    return
  }
  func.func @transform_0(%arg0: i32) -> (i32, i32, i32) {
    %c0_i32 = arith.constant 0 : i32
    %c0_i32_0 = arith.constant 0 : i32
    %c0_i32_1 = arith.constant 0 : i32
    return %arg0, %c0_i32, %c0_i32_0 : i32, i32, i32
  }
  func.func @transform_1(%arg0: i32) -> (i32, i32) {
    %c0_i32 = arith.constant 0 : i32
    %c0_i32_0 = arith.constant 0 : i32
    %c0_i32_1 = arith.constant 0 : i32
    return %c0_i32, %c0_i32_0 : i32, i32
  }
  func.func @transform_2(%arg0: i32) -> (i32, i32) {
    %c0_i32 = arith.constant 0 : i32
    %c0_i32_0 = arith.constant 0 : i32
    %c0_i32_1 = arith.constant 0 : i32
    return %c0_i32, %c0_i32_0 : i32, i32
  }
  func.func @transform_3(%arg0: i32) -> (i32, i32, i32) {
    %c0_i32 = arith.constant 0 : i32
    %c0_i32_0 = arith.constant 0 : i32
    %c0_i32_1 = arith.constant 0 : i32
    return %arg0, %c0_i32, %c0_i32_0 : i32, i32, i32
  }
}

</mosaic_0001>

<llo_original>
// kernel: tpu_custom_call.1
$region0: #{tpu_custom_call.1}
  #allocation0 [shape = 'u32[]', space=smem, size = 0x4, offset = 0x4, fixed_abs, tag = 'smem constant byte address 0x4 - core index']
  #allocation1 [shape = 'u32[144,128]{1,0:T(1,128)}', space=vmem, size = 0x12000, scoped, tag = 'internal scratch']
  %s0 = inlined_call_operand.vmem [shape: f32[2,64,8], index: 0, kind: input, shape index: {}]
  %s1 = inlined_call_operand.vmem [shape: f32[8,16], index: 1, kind: input, shape index: {}]
  %s2 = inlined_call_operand.vmem [shape: f32[1,16], index: 2, kind: input, shape index: {}]
  %s3 = inlined_call_operand.vmem [shape: f32[2,64,16], index: 3, kind: output, shape index: {}]
  %s4 = sld [smem:[#allocation0]]
  $region45: #{tpu_custom_call.1} parent=0
    _
  %s6 = ssub.s32 1, %s4
  %s7 = scalar_select 0, %s6, %s4
  loop: start=0, step=1, limit=4
  $region2: #{tpu_custom_call.1} parent=0 // loop_pre_header
    _
  $region3: #{tpu_custom_call.1} parent=0 // loop_header
    %s9 = sphi 0, %s13
    %p10 = scmp.ge.s32.totalorder %s9, 4
    %s19 = sphi 0, %s21
    %s22 = sphi 0, %s19
    %s23 = sphi 0, %s22
    %s39 = sphi 0, %s23
    %s43 = sphi 0, %s43
    %s45 = sphi 0, %s43
    %s46 = sphi 0, %s45
    %s60 = sphi 0, %s46
    %s64 = sphi 0, %s64
    %s66 = sphi 0, %s64
    %s67 = sphi 0, %s66
    %s81 = sphi 0, %s67
    %s87 = sphi 0, %s89
    %s90 = sphi 0, %s87
    %s91 = sphi 0, %s90
    %s107 = sphi 0, %s91
  $region4: #{tpu_custom_call.1} parent=0 // loop_header_branch
    %12 = sbr.rel (%p10) target = $region8
  $region5: #{tpu_custom_call.1} parent=0 // loop_body
    %s14 = ssub.s32 %s9, 1
    %s15 = ssub.s32 %s9, 2
    %s16 = sadd.s32 %s9, 1
    %s17 = ssub.s32 %s9, %s16
    %p18 = scmp.eq.s32.totalorder %s17, 0
    %s20 = sadd.s32 %s19, 1
    %s21 = scalar_select %p18, %s19, %s20
    %p24 = pneg %p18
    %p25 = scmp.eq.s32.totalorder %s9, 1
    %p26 = por %p24, %p25
    %p27 = scmp.ne.s32.totalorder %s19, %s22
    %p28 = scmp.eq.s32.totalorder %s9, 0
    %p29 = por %p27, %p28
    %p30 = scmp.ne.s32.totalorder %s19, %s22
    %p31 = scmp.eq.s32.totalorder %s14, 1
    %p32 = por %p30, %p31
    %p33 = scmp.ne.s32.totalorder %s22, %s23
    %p34 = scmp.eq.s32.totalorder %s14, 0
    %p35 = por %p33, %p34
    %p36 = scmp.ne.s32.totalorder %s22, %s23
    %p37 = scmp.eq.s32.totalorder %s15, 1
    %p38 = por %p36, %p37
    %p40 = scmp.ne.s32.totalorder %s23, %s39
    %p41 = scmp.eq.s32.totalorder %s15, 0
    %p42 = por %p40, %p41
    %s44 = sadd.s32 %s43, 1
    %p47 = scmp.eq.s32.totalorder %s9, 1
    %p48 = scmp.ne.s32.totalorder %s43, %s45
    %p49 = scmp.eq.s32.totalorder %s9, 0
    %p50 = por %p48, %p49
    %p51 = scmp.ne.s32.totalorder %s43, %s45
    %p52 = scmp.eq.s32.totalorder %s14, 1
    %p53 = por %p51, %p52
    %p54 = scmp.ne.s32.totalorder %s45, %s46
    %p55 = scmp.eq.s32.totalorder %s14, 0
    %p56 = por %p54, %p55
    %p57 = scmp.ne.s32.totalorder %s45, %s46
    %p58 = scmp.eq.s32.totalorder %s15, 1
    %p59 = por %p57, %p58
    %p61 = scmp.ne.s32.totalorder %s46, %s60
    %p62 = scmp.eq.s32.totalorder %s15, 0
    %p63 = por %p61, %p62
    %s65 = sadd.s32 %s64, 1
    %p68 = scmp.eq.s32.totalorder %s9, 1
    %p69 = scmp.ne.s32.totalorder %s64, %s66
    %p70 = scmp.eq.s32.totalorder %s9, 0
    %p71 = por %p69, %p70
    %p72 = scmp.ne.s32.totalorder %s64, %s66
    %p73 = scmp.eq.s32.totalorder %s14, 1
    %p74 = por %p72, %p73
    %p75 = scmp.ne.s32.totalorder %s66, %s67
    %p76 = scmp.eq.s32.totalorder %s14, 0
    %p77 = por %p75, %p76
    %p78 = scmp.ne.s32.totalorder %s66, %s67
    %p79 = scmp.eq.s32.totalorder %s15, 1
    %p80 = por %p78, %p79
    %p82 = scmp.ne.s32.totalorder %s67, %s81
    %p83 = scmp.eq.s32.totalorder %s15, 0
    %p84 = por %p82, %p83
    %s85 = ssub.s32 %s9, %s16
    %p86 = scmp.eq.s32.totalorder %s85, 0
    %s88 = sadd.s32 %s87, 1
    %s89 = scalar_select %p86, %s87, %s88
    %p92 = pneg %p86
    %p93 = scmp.eq.s32.totalorder %s9, 1
    %p94 = por %p92, %p93
    %p95 = scmp.ne.s32.totalorder %s87, %s90
    %p96 = scmp.eq.s32.totalorder %s9, 0
    %p97 = por %p95, %p96
    %p98 = scmp.ne.s32.totalorder %s87, %s90
    %p99 = scmp.eq.s32.totalorder %s14, 1
    %p100 = por %p98, %p99
    %p101 = scmp.ne.s32.totalorder %s90, %s91
    %p102 = scmp.eq.s32.totalorder %s14, 0
    %p103 = por %p101, %p102
    %p104 = scmp.ne.s32.totalorder %s90, %s91
    %p105 = scmp.eq.s32.totalorder %s15, 1
    %p106 = por %p104, %p105
    %p108 = scmp.ne.s32.totalorder %s91, %s107
    %p109 = scmp.eq.s32.totalorder %s15, 0
    %p110 = por %p108, %p109
    %p111 = scmp.le.s32.totalorder 1, %s9
    %p112 = scmp.lt.s32.totalorder %s9, 3
    %p113 = pnand %p111, %p112
    %p114 = pneg %p113
    // Predicated region
    $region9: #{tpu_custom_call.1} parent=5 // pred_check
      _
    $region10: #{tpu_custom_call.1} parent=5 // pred_check_branch
      %116 = sbr.rel (%p113) target = $region12
    $region11: #{tpu_custom_call.1} parent=5 // pred_region
      %s117 = ssub.s32 %s9, 1
      // Predicated region
      $region13: #{tpu_custom_call.1} parent=11 // pred_check
        %p118 = pneg %p56
      $region14: #{tpu_custom_call.1} parent=11 // pred_check_branch
        %120 = sbr.rel (%p118) target = $region16
      $region15: #{tpu_custom_call.1} parent=11 // pred_region
        _
      $region16: #{tpu_custom_call.1} parent=11 // pred_fallthru
        _
      // Predicated region
      $region17: #{tpu_custom_call.1} parent=11 // pred_check
        %p121 = pneg %p77
      $region18: #{tpu_custom_call.1} parent=11 // pred_check_branch
        %123 = sbr.rel (%p121) target = $region20
      $region19: #{tpu_custom_call.1} parent=11 // pred_region
        _
      $region20: #{tpu_custom_call.1} parent=11 // pred_fallthru
        _
    $region12: #{tpu_custom_call.1} parent=5 // pred_fallthru
      _
    %p124 = scmp.lt.s32.totalorder %s9, 2
    // Predicated region
    $region21: #{tpu_custom_call.1} parent=5 // pred_check
      %p125 = pneg %p124
    $region22: #{tpu_custom_call.1} parent=5 // pred_check_branch
      %127 = sbr.rel (%p125) target = $region24
    $region23: #{tpu_custom_call.1} parent=5 // pred_region
      // Predicated region
      $region25: #{tpu_custom_call.1} parent=23 // pred_check
        %p128 = pneg %p29
      $region26: #{tpu_custom_call.1} parent=23 // pred_check_branch
        %130 = sbr.rel (%p128) target = $region28
      $region27: #{tpu_custom_call.1} parent=23 // pred_region
        %p131 = scmp.lt.s32.totalorder %s9, 1
        %s132 = scalar_select %p131, %s9, 1
        %s133 = smul.addr %s132, 8
        %s134 = smul.addr %s133, 8
        %s135 = scalar_lea.vmem %s0, %s134
      $region28: #{tpu_custom_call.1} parent=23 // pred_fallthru
        _
    $region24: #{tpu_custom_call.1} parent=5 // pred_fallthru
      _
    %p136 = scmp.le.s32.totalorder 1, %s9
    %p137 = scmp.lt.s32.totalorder %s9, 3
    %p138 = pnand %p136, %p137
    %p139 = pneg %p138
    // Predicated region
    $region29: #{tpu_custom_call.1} parent=5 // pred_check
      _
    $region30: #{tpu_custom_call.1} parent=5 // pred_check_branch
      %141 = sbr.rel (%p138) target = $region32
    $region31: #{tpu_custom_call.1} parent=5 // pred_region
      %s142 = ssub.s32 %s9, 1
      %p143 = scmp.lt.s32.totalorder %s14, 1
      %s144 = scalar_select %p143, %s14, 1
      %s145 = smul.addr %s144, 8
      %s146 = smul.addr %s145, 8
      %s147 = scalar_lea.vmem %s0, %s146
      %p148 = pneg %p35
      %p149 = pneg %p32
      %p150 = pneg %p56
      %p151 = pneg %p53
      %p152 = pneg %p77
      %p153 = pneg %p74
      %p154 = pneg %p103
      %p155 = pneg %p100
      %p156 = scmp.lt.s32.totalorder %s14, 1
      %s157 = scalar_select %p156, %s14, 1
      %s158 = smul.addr %s157, 8
      %s159 = smul.addr %s158, 8
      %s160 = scalar_lea.vmem %s3, %s159
      %p161 = scmp.lt.s32.totalorder %s14, 1
      %s162 = scalar_select %p161, %s14, 1
      %s163 = smul.addr %s162, 8
      %s164 = smul.addr %s163, 8
      %s165 = scalar_lea.vmem %s0, %s164
      %p166 = scmp.lt.s32.totalorder %s14, 1
      %s167 = scalar_select %p166, %s14, 1
      %s168 = smul.addr %s167, 8
      %s169 = smul.addr %s168, 8
      %s170 = scalar_lea.vmem %s3, %s169
      %v171 = vld [vmem:[%s165] sm:$0xff]
      %v172 = vld [vmem:[%s165 + $0x8] sm:$0xff]
      %v173 = vld [vmem:[%s165 + $0x10] sm:$0xff]
      %v174 = vld [vmem:[%s165 + $0x18] sm:$0xff]
      %v175 = vld [vmem:[%s165 + $0x20] sm:$0xff]
      %v176 = vld [vmem:[%s165 + $0x28] sm:$0xff]
      %v177 = vld [vmem:[%s165 + $0x30] sm:$0xff]
      %v178 = vld [vmem:[%s165 + $0x38] sm:$0xff]
      %v179 = vld [vmem:[%s1] sm:$0xff]
      %v180 = vld [vmem:[%s2] sm:$0x1]
      %v182 = vlaneseq
      %v183 = vshrl.u32 %v182, 7
      %v184 = vsub.s32 0, %v183
      %v185 = vrot.slane %v180, %v184
      %vm187 = vcmask 64512
      %v189 = vsel %vm187, %v171, 0
      %v192 = vsel %vm187, %v172, 0
      %v195 = vsel %vm187, %v173, 0
      %v198 = vsel %vm187, %v174, 0
      %v201 = vsel %vm187, %v175, 0
      %v204 = vsel %vm187, %v176, 0
      %v207 = vsel %vm187, %v177, 0
      %v210 = vsel %vm187, %v178, 0
      %212 = vmatprep.subr.mxu0 0.0
      %213 = vmatpush1.msra.mxu0 0.0
      %214 = vmatprep.subr.mxu0 0.0
      %215 = vmatpush1.msra.mxu0 0.0
      %216 = vmatprep.subr.mxu0 0.0
      %217 = vmatpush1.msra.mxu0 0.0
      %218 = vmatprep.subr.mxu0 0.0
      %219 = vmatpush1.msra.mxu0 0.0
      %220 = vmatprep.subr.mxu0 0.0
      %221 = vmatpush1.msra.mxu0 0.0
      %222 = vmatprep.subr.mxu0 0.0
      %223 = vmatpush1.msra.mxu0 0.0
      %224 = vmatprep.subr.mxu0 0.0
      %225 = vmatpush1.msra.mxu0 0.0
      %226 = vmatprep.subr.mxu0 0.0
      %227 = vmatpush1.msra.mxu0 0.0
      %228 = vmatprep.subr.mxu0 0.0
      %229 = vmatpush1.msra.mxu0 0.0
      %230 = vmatprep.subr.mxu0 0.0
      %231 = vmatpush1.msra.mxu0 0.0
      %232 = vmatprep.subr.mxu0 0.0
      %233 = vmatpush1.msra.mxu0 0.0
      %234 = vmatprep.subr.mxu0 0.0
      %235 = vmatpush1.msra.mxu0 0.0
      %236 = vmatprep.subr.mxu0 0.0
      %237 = vmatpush1.msra.mxu0 0.0
      %238 = vmatprep.subr.mxu0 0.0
      %239 = vmatpush1.msra.mxu0 0.0
      %240 = vmatprep.subr.mxu0 0.0
      %241 = vmatpush1.msra.mxu0 0.0
      %242 = vmatprep.subr.mxu0 0.0
      %243 = vmatpush1.msra.mxu0 %v179
      %244 = vmatprep.subr.mxu0 0.0
      %245 = vmatpush2.msra.mxu0 0.0
      %246 = vmatprep.subr.mxu0 0.0
      %247 = vmatpush2.msra.mxu0 0.0
      %248 = vmatprep.subr.mxu0 0.0
      %249 = vmatpush2.msra.mxu0 0.0
      %250 = vmatprep.subr.mxu0 0.0
      %251 = vmatpush2.msra.mxu0 0.0
      %252 = vmatprep.subr.mxu0 0.0
      %253 = vmatpush2.msra.mxu0 0.0
      %254 = vmatprep.subr.mxu0 0.0
      %255 = vmatpush2.msra.mxu0 0.0
      %256 = vmatprep.subr.mxu0 0.0
      %257 = vmatpush2.msra.mxu0 0.0
      %258 = vmatprep.subr.mxu0 0.0
      %259 = vmatpush2.msra.mxu0 0.0
      %260 = vmatprep.subr.mxu0 0.0
      %261 = vmatpush2.msra.mxu0 0.0
      %262 = vmatprep.subr.mxu0 0.0
      %263 = vmatpush2.msra.mxu0 0.0
      %264 = vmatprep.subr.mxu0 0.0
      %265 = vmatpush2.msra.mxu0 0.0
      %266 = vmatprep.subr.mxu0 0.0
      %267 = vmatpush2.msra.mxu0 0.0
      %268 = vmatprep.subr.mxu0 0.0
      %269 = vmatpush2.msra.mxu0 0.0
      %270 = vmatprep.subr.mxu0 0.0
      %271 = vmatpush2.msra.mxu0 0.0
      %272 = vmatprep.subr.mxu0 0.0
      %273 = vmatpush2.msra.mxu0 0.0
      %274 = vmatprep.subr.mxu0 0.0
      %275 = vmatpush2.msra.mxu0 0.0
      %276 = vmatprep.mubr.f32.mxu0 0.0
      %277 = vmatmul.mubr.f32.gmra.mxu0 %v189
      %v278 = vpop.f32.mrf.mxu0
      %v279 = vadd.f32 %v185, %v278
      %v280 = vpop.f32.mrf.mxu0
      %281 = vmatprep.mubr.f32.mxu0 0.0
      %282 = vmatmul.mubr.f32.gmra.mxu0 %v192
      %v283 = vpop.f32.mrf.mxu0
      %v284 = vadd.f32 %v185, %v283
      %v285 = vpop.f32.mrf.mxu0
      %286 = vmatprep.mubr.f32.mxu0 0.0
      %287 = vmatmul.mubr.f32.gmra.mxu0 %v195
      %v288 = vpop.f32.mrf.mxu0
      %v289 = vadd.f32 %v185, %v288
      %v290 = vpop.f32.mrf.mxu0
      %291 = vmatprep.mubr.f32.mxu0 0.0
      %292 = vmatmul.mubr.f32.gmra.mxu0 %v198
      %v293 = vpop.f32.mrf.mxu0
      %v294 = vadd.f32 %v185, %v293
      %v295 = vpop.f32.mrf.mxu0
      %296 = vmatprep.mubr.f32.mxu0 0.0
      %297 = vmatmul.mubr.f32.gmra.mxu0 %v201
      %v298 = vpop.f32.mrf.mxu0
      %v299 = vadd.f32 %v185, %v298
      %v300 = vpop.f32.mrf.mxu0
      %301 = vmatprep.mubr.f32.mxu0 0.0
      %302 = vmatmul.mubr.f32.gmra.mxu0 %v204
      %v303 = vpop.f32.mrf.mxu0
      %v304 = vadd.f32 %v185, %v303
      %v305 = vpop.f32.mrf.mxu0
      %306 = vmatprep.mubr.f32.mxu0 0.0
      %307 = vmatmul.mubr.f32.gmra.mxu0 %v207
      %v308 = vpop.f32.mrf.mxu0
      %v309 = vadd.f32 %v185, %v308
      %v310 = vpop.f32.mrf.mxu0
      %311 = vmatprep.mubr.f32.mxu0 0.0
      %312 = vmatmul.mubr.f32.gmra.mxu0 %v210
      %v313 = vpop.f32.mrf.mxu0
      %v314 = vadd.f32 %v185, %v313
      %v315 = vpop.f32.mrf.mxu0
      %316 = vdwg.mxu0
      %vm317 = vcmask 130048
      %318 = vst.msk [vmem:[%s170] sm:$0xff] %vm317, %v279
      %319 = vst.msk [vmem:[%s170 + $0x8] sm:$0xff] %vm317, %v284
      %320 = vst.msk [vmem:[%s170 + $0x10] sm:$0xff] %vm317, %v289
      %321 = vst.msk [vmem:[%s170 + $0x18] sm:$0xff] %vm317, %v294
      %322 = vst.msk [vmem:[%s170 + $0x20] sm:$0xff] %vm317, %v299
      %323 = vst.msk [vmem:[%s170 + $0x28] sm:$0xff] %vm317, %v304
      %324 = vst.msk [vmem:[%s170 + $0x30] sm:$0xff] %vm317, %v309
      %325 = vst.msk [vmem:[%s170 + $0x38] sm:$0xff] %vm317, %v314
      %p326 = scmp.lt.s32.totalorder %s14, 1
      %s327 = scalar_select %p326, %s14, 1
      %s328 = smul.addr %s327, 8
      %s329 = smul.addr %s328, 8
      %s330 = scalar_lea.vmem %s3, %s329
      // Predicated region
      $region33: #{tpu_custom_call.1} parent=31 // pred_check
        %p331 = pneg %p100
      $region34: #{tpu_custom_call.1} parent=31 // pred_check_branch
        %333 = sbr.rel (%p331) target = $region36
      $region35: #{tpu_custom_call.1} parent=31 // pred_region
        _
      $region36: #{tpu_custom_call.1} parent=31 // pred_fallthru
        _
    $region32: #{tpu_custom_call.1} parent=5 // pred_fallthru
      _
    %p334 = scmp.le.s32.totalorder 2, %s9
    // Predicated region
    $region37: #{tpu_custom_call.1} parent=5 // pred_check
      %p335 = pneg %p334
    $region38: #{tpu_custom_call.1} parent=5 // pred_check_branch
      %337 = sbr.rel (%p335) target = $region40
    $region39: #{tpu_custom_call.1} parent=5 // pred_region
      %s338 = ssub.s32 %s9, 2
      // Predicated region
      $region41: #{tpu_custom_call.1} parent=39 // pred_check
        %p339 = pneg %p106
      $region42: #{tpu_custom_call.1} parent=39 // pred_check_branch
        %341 = sbr.rel (%p339) target = $region44
      $region43: #{tpu_custom_call.1} parent=39 // pred_region
        %p342 = scmp.lt.s32.totalorder %s15, 1
        %s343 = scalar_select %p342, %s15, 1
        %s344 = smul.addr %s343, 8
        %s345 = smul.addr %s344, 8
        %s346 = scalar_lea.vmem %s3, %s345
      $region44: #{tpu_custom_call.1} parent=39 // pred_fallthru
        _
    $region40: #{tpu_custom_call.1} parent=5 // pred_fallthru
      _
  $region6: #{tpu_custom_call.1} parent=0 // loop_footer
    %s13 = sadd.s32 1, %s9
  $region7: #{tpu_custom_call.1} parent=0 // loop_footer_branch
    %8 = sbr.rel target = $region3
  $region8: #{tpu_custom_call.1} parent=0 // loop_exit
    _

</llo_original>
